<compile_context>
chip_gen: v7x
topology: tpu7x:2x2x1
jax: 0.10.0
libtpu: 0.0.40
codegen_flags: <defaults>
</compile_context>

<pallas_src>
import functools

import jax
import jax.numpy as jnp
from jax.experimental import pallas as pl
from jax.experimental.pallas import tpu as pltpu

ALPHA = 0.7
BETA = 0.3
SMOOTH = 1e-6

LANES = 128
SUBLANES = 8
TARGET_BLOCK_BYTES = 2 * 1024 * 1024   # per input, per pipeline buffer
NUM_CORE_SPLITS = 2                    # leading "parallel" axis (v7x dual-TC; no-op elsewhere)


def _round_up(x, m):
    return (x + m - 1) // m * m


def _tversky_kernel(x_ref, t_ref, out_ref, acc_st, acc_s, acc_t, *,
                    n, block_rows, tiles_per_core):
    c = pl.program_id(0)            # core-split index
    i = pl.program_id(1)            # tile index within this core's range
    last = pl.num_programs(1) - 1

    @pl.when(i == 0)
    def _init():
        acc_st[...] = jnp.zeros_like(acc_st)
        acc_s[...] = jnp.zeros_like(acc_s)
        acc_t[...] = jnp.zeros_like(acc_t)

    x = x_ref[...].astype(jnp.float32)
    t = t_ref[...].astype(jnp.float32)
    # sigmoid(x) == 0.5 * tanh(0.5 * x) + 0.5 : single EUP push, no full divide.
    s = 0.5 * jnp.tanh(0.5 * x) + 0.5

    def _accumulate(s_v, t_v):
        # Fold the (block_rows, 128) tile to one (8, 128) vreg per quantity
        # (VPU-only adds over the leading axis), then add into the small
        # resident accumulators.  Identity trick: FP/FN derived later from
        # sum(s), sum(t), sum(s*t).
        acc_st[...] += (s_v * t_v).reshape(-1, SUBLANES, LANES).sum(axis=0)
        acc_s[...] += s_v.reshape(-1, SUBLANES, LANES).sum(axis=0)
        acc_t[...] += t_v.reshape(-1, SUBLANES, LANES).sum(axis=0)

    logical_block = c * tiles_per_core + i
    n_full_rows = n // LANES          # rows completely filled with valid data
    n_rem = n % LANES                 # valid lanes in the single partial row
    step_end_row = (logical_block + 1) * block_rows
    needs_mask = step_end_row > n_full_rows

    @pl.when(jnp.logical_not(needs_mask))
    def _fast():
        _accumulate(s, t)

    @pl.when(needs_mask)
    def _masked():
        # Ragged / duplicated (clamped) tile: mask invalid positions with a
        # jnp.where SELECT (edge-DMA padding may be garbage / NaN -- never
        # turn this into a multiply-by-mask).  Row/lane compares avoid any
        # flat-index int32 overflow for huge tensors.
        row = jax.lax.broadcasted_iota(jnp.int32, (block_rows, LANES), 0)
        lane = jax.lax.broadcasted_iota(jnp.int32, (block_rows, LANES), 1)
        grow = logical_block * block_rows + row
        valid = (grow < n_full_rows) | ((grow == n_full_rows) & (lane < n_rem))
        _accumulate(jnp.where(valid, s, 0.0), jnp.where(valid, t, 0.0))

    @pl.when(i == last)
    def _finalize():
        # Per-core partials: [sum(s*t), sum(s), sum(t)], each an (8,128) vreg.
        out_ref[0, 0] = acc_st[...]
        out_ref[0, 1] = acc_s[...]
        out_ref[0, 2] = acc_t[...]


def tversky_loss(inputs, targets, alpha=ALPHA, beta=BETA, smooth=SMOOTH,
                 binary_targets=True):
    """Pallas-backed Tversky loss, matching PyTorch TverskyLoss.forward."""
    if binary_targets and targets.dtype == jnp.float32:
        # Exact for 0/1 masks; halves the targets' DMA bytes.  Under jit this
        # convert fuses with whatever produced `targets`.
        targets = targets.astype(jnp.bfloat16)

    n = inputs.size
    itemsize = max(inputs.dtype.itemsize, targets.dtype.itemsize)
    max_block_rows = max(
        SUBLANES, (TARGET_BLOCK_BYTES // (LANES * itemsize)) // SUBLANES * SUBLANES)

    rows = pl.cdiv(n, LANES)
    if rows <= max_block_rows:
        # Small input: a single aligned tile per core-split (pad is <= ~2 MiB).
        block_rows = _round_up(rows, SUBLANES)
        padded_rows = block_rows
    else:
        # Large input: no full-tensor pad; ragged edge handled in-kernel.
        block_rows = max_block_rows
        padded_rows = rows

    padded_len = padded_rows * LANES
    x_flat = inputs.reshape(-1)
    t_flat = targets.reshape(-1)
    if padded_len != n:
        x_flat = jnp.pad(x_flat, (0, padded_len - n))
        t_flat = jnp.pad(t_flat, (0, padded_len - n))
    x2d = x_flat.reshape(padded_rows, LANES)
    t2d = t_flat.reshape(padded_rows, LANES)

    num_tiles = pl.cdiv(padded_rows, block_rows)
    tiles_per_core = pl.cdiv(num_tiles, NUM_CORE_SPLITS)

    def _in_map(c, i):
        # Clamp so every DMA stays in-bounds; clamped (duplicate) steps are
        # fully masked in-kernel and contribute zero.
        return (jnp.minimum(c * tiles_per_core + i, num_tiles - 1), 0)

    kernel = functools.partial(
        _tversky_kernel, n=n, block_rows=block_rows, tiles_per_core=tiles_per_core)

    out_elems = NUM_CORE_SPLITS * 3 * SUBLANES * LANES
    partials = pl.pallas_call(
        kernel,
        out_shape=jax.ShapeDtypeStruct(
            (NUM_CORE_SPLITS, 3, SUBLANES, LANES), jnp.float32),
        grid_spec=pltpu.PrefetchScalarGridSpec(
            num_scalar_prefetch=0,
            grid=(NUM_CORE_SPLITS, tiles_per_core),
            in_specs=[
                pl.BlockSpec((block_rows, LANES), _in_map),
                pl.BlockSpec((block_rows, LANES), _in_map),
            ],
            out_specs=pl.BlockSpec((1, 3, SUBLANES, LANES),
                                   lambda c, i: (c, 0, 0, 0)),
            scratch_shapes=[
                pltpu.VMEM((SUBLANES, LANES), jnp.float32),  # sum(s*t)
                pltpu.VMEM((SUBLANES, LANES), jnp.float32),  # sum(s)
                pltpu.VMEM((SUBLANES, LANES), jnp.float32),  # sum(t)
            ],
        ),
        compiler_params=pltpu.CompilerParams(
            dimension_semantics=("parallel", "arbitrary"),
        ),
        cost_estimate=pl.CostEstimate(
            flops=6 * n,
            transcendentals=n,
            bytes_accessed=int(x2d.nbytes) + int(t2d.nbytes) + out_elems * 4,
        ),
    )(x2d, t2d)

    # Tiny combine + Tversky epilogue in the wrapper (6 KiB of data).
    sums = jnp.sum(partials, axis=(0, 2, 3))
    tp, s_sum, t_sum = sums[0], sums[1], sums[2]
    fp = s_sum - tp
    fn = t_sum - tp
    tversky_index = (tp + smooth) / (tp + alpha * fp + beta * fn + smooth)
    return 1.0 - tversky_index


def _reference_tversky(inputs, targets, alpha=ALPHA, beta=BETA, smooth=SMOOTH):
    s = jax.nn.sigmoid(inputs.astype(jnp.float32))
    t = targets.astype(jnp.float32)
    tp = jnp.sum(s * t)
    fp = jnp.sum((1.0 - t) * s)
    fn = jnp.sum(t * (1.0 - s))
    return 1.0 - (tp + smooth) / (tp + alpha * fp + beta * fn + smooth)


if __name__ == "__main__":
    key = jax.random.PRNGKey(0)
    k1, k2 = jax.random.split(key)

    # NCHW, like the PyTorch module would see from a segmentation head.
    x = jax.random.normal(k1, (2, 4, 16, 16), dtype=jnp.float32)             # logits
    t = (jax.random.uniform(k2, (2, 4, 16, 16)) > 0.5).astype(jnp.float32)   # binary mask

    loss = tversky_loss(x, t)
    jax.block_until_ready(loss)

    ref = _reference_tversky(x, t)
    assert jnp.allclose(loss, ref, atol=1e-5, rtol=1e-4), (loss, ref)

    print("KERNEL_OK")
</pallas_src>

<mosaic_0001>
module attributes {stable_mosaic.version = 11 : i64} {
  func.func @_tversky_kernel(%arg0: i32, %arg1: i32, %arg2: memref<16x128xf32, #tpu.memory_space<vmem>>, %arg3: memref<16x128xbf16, #tpu.memory_space<vmem>>, %arg4: memref<1x3x8x128xf32, #tpu.memory_space<vmem>>, %arg5: memref<8x128xf32, #tpu.memory_space<vmem>>, %arg6: memref<8x128xf32, #tpu.memory_space<vmem>>, %arg7: memref<8x128xf32, #tpu.memory_space<vmem>>) attributes {dimension_semantics = [#tpu.dimension_semantics<parallel>, #tpu.dimension_semantics<arbitrary>], iteration_bounds = array<i64: 2, 1>, scalar_prefetch = 0 : i64, scratch_operands = 3 : i64, tpu.core_type = #tpu.core_type<tc>, window_params = [{transform_indices = @transform_0, window_bounds = array<i64: 16, 128>}, {transform_indices = @transform_1, window_bounds = array<i64: 16, 128>}, {transform_indices = @transform_2, window_bounds = array<i64: 1, 3, 8, 128>}]} {
    %c0_i32 = arith.constant 0 : i32
    %0 = arith.cmpi eq, %arg1, %c0_i32 : i32
    %1 = arith.extui %0 : i1 to i32
    %c0_i32_0 = arith.constant 0 : i32
    %2 = arith.cmpi ne, %1, %c0_i32_0 : i32
    scf.if %2 {
      %cst_12 = arith.constant 0.000000e+00 : f32
      %26 = vector.broadcast %cst_12 : f32 to vector<8x128xf32>
      %c0_13 = arith.constant 0 : index
      %c0_14 = arith.constant 0 : index
      %27 = vector.load %arg5[%c0_13, %c0_14] : memref<8x128xf32, #tpu.memory_space<vmem>>, vector<8x128xf32>
      tpu.vector_store %arg5[%c0_13, %c0_14], %26 {strides = array<i32>} : memref<8x128xf32, #tpu.memory_space<vmem>>, vector<8x128xf32>,
      %cst_15 = arith.constant 0.000000e+00 : f32
      %28 = vector.broadcast %cst_15 : f32 to vector<8x128xf32>
      %c0_16 = arith.constant 0 : index
      %c0_17 = arith.constant 0 : index
      %29 = vector.load %arg6[%c0_16, %c0_17] : memref<8x128xf32, #tpu.memory_space<vmem>>, vector<8x128xf32>
      tpu.vector_store %arg6[%c0_16, %c0_17], %28 {strides = array<i32>} : memref<8x128xf32, #tpu.memory_space<vmem>>, vector<8x128xf32>,
      %cst_18 = arith.constant 0.000000e+00 : f32
      %30 = vector.broadcast %cst_18 : f32 to vector<8x128xf32>
      %c0_19 = arith.constant 0 : index
      %c0_20 = arith.constant 0 : index
      %31 = vector.load %arg7[%c0_19, %c0_20] : memref<8x128xf32, #tpu.memory_space<vmem>>, vector<8x128xf32>
      tpu.vector_store %arg7[%c0_19, %c0_20], %30 {strides = array<i32>} : memref<8x128xf32, #tpu.memory_space<vmem>>, vector<8x128xf32>,
    } else {
    }
    %c0 = arith.constant 0 : index
    %c0_1 = arith.constant 0 : index
    %3 = vector.load %arg2[%c0, %c0_1] : memref<16x128xf32, #tpu.memory_space<vmem>>, vector<16x128xf32>
    %c0_2 = arith.constant 0 : index
    %c0_3 = arith.constant 0 : index
    %4 = vector.load %arg3[%c0_2, %c0_3] : memref<16x128xbf16, #tpu.memory_space<vmem>>, vector<16x128xbf16>
    %5 = arith.extf %4 : vector<16x128xbf16> to vector<16x128xf32>
    %cst = arith.constant 5.000000e-01 : f32
    %6 = vector.broadcast %cst : f32 to vector<16x128xf32>
    %7 = arith.mulf %6, %3 : vector<16x128xf32>
    %8 = math.tanh %7 : vector<16x128xf32>
    %cst_4 = arith.constant 5.000000e-01 : f32
    %9 = vector.broadcast %cst_4 : f32 to vector<16x128xf32>
    %10 = arith.mulf %9, %8 : vector<16x128xf32>
    %cst_5 = arith.constant 5.000000e-01 : f32
    %11 = vector.broadcast %cst_5 : f32 to vector<16x128xf32>
    %12 = arith.addf %10, %11 : vector<16x128xf32>
    %c1_i32 = arith.constant 1 : i32
    %13 = arith.muli %arg0, %c1_i32 : i32
    %14 = arith.addi %13, %arg1 : i32
    %c1_i32_6 = arith.constant 1 : i32
    %15 = arith.addi %14, %c1_i32_6 : i32
    %c16_i32 = arith.constant 16 : i32
    %16 = arith.muli %15, %c16_i32 : i32
    %c16_i32_7 = arith.constant 16 : i32
    %17 = arith.cmpi sgt, %16, %c16_i32_7 : i32
    %true = arith.constant true
    %18 = arith.xori %17, %true : i1
    %19 = arith.extui %18 : i1 to i32
    %c0_i32_8 = arith.constant 0 : i32
    %20 = arith.cmpi ne, %19, %c0_i32_8 : i32
    scf.if %20 {
      %c0_12 = arith.constant 0 : index
      %c0_13 = arith.constant 0 : index
      %26 = vector.load %arg5[%c0_12, %c0_13] : memref<8x128xf32, #tpu.memory_space<vmem>>, vector<8x128xf32>
      %27 = arith.mulf %12, %5 : vector<16x128xf32>
      %28 = vector.shape_cast %27 : vector<16x128xf32> to vector<2x8x128xf32>
      %cst_14 = arith.constant dense<0.000000e+00> : vector<8x128xf32>
      %29 = vector.multi_reduction <add>, %28, %cst_14 [0] : vector<2x8x128xf32> to vector<8x128xf32>
      %30 = arith.addf %26, %29 : vector<8x128xf32>
      %c0_15 = arith.constant 0 : index
      %c0_16 = arith.constant 0 : index
      %31 = vector.load %arg5[%c0_15, %c0_16] : memref<8x128xf32, #tpu.memory_space<vmem>>, vector<8x128xf32>
      tpu.vector_store %arg5[%c0_15, %c0_16], %30 {strides = array<i32>} : memref<8x128xf32, #tpu.memory_space<vmem>>, vector<8x128xf32>,
      %c0_17 = arith.constant 0 : index
      %c0_18 = arith.constant 0 : index
      %32 = vector.load %arg6[%c0_17, %c0_18] : memref<8x128xf32, #tpu.memory_space<vmem>>, vector<8x128xf32>
      %33 = vector.shape_cast %12 : vector<16x128xf32> to vector<2x8x128xf32>
      %cst_19 = arith.constant dense<0.000000e+00> : vector<8x128xf32>
      %34 = vector.multi_reduction <add>, %33, %cst_19 [0] : vector<2x8x128xf32> to vector<8x128xf32>
      %35 = arith.addf %32, %34 : vector<8x128xf32>
      %c0_20 = arith.constant 0 : index
      %c0_21 = arith.constant 0 : index
      %36 = vector.load %arg6[%c0_20, %c0_21] : memref<8x128xf32, #tpu.memory_space<vmem>>, vector<8x128xf32>
      tpu.vector_store %arg6[%c0_20, %c0_21], %35 {strides = array<i32>} : memref<8x128xf32, #tpu.memory_space<vmem>>, vector<8x128xf32>,
      %c0_22 = arith.constant 0 : index
      %c0_23 = arith.constant 0 : index
      %37 = vector.load %arg7[%c0_22, %c0_23] : memref<8x128xf32, #tpu.memory_space<vmem>>, vector<8x128xf32>
      %38 = vector.shape_cast %5 : vector<16x128xf32> to vector<2x8x128xf32>
      %cst_24 = arith.constant dense<0.000000e+00> : vector<8x128xf32>
      %39 = vector.multi_reduction <add>, %38, %cst_24 [0] : vector<2x8x128xf32> to vector<8x128xf32>
      %40 = arith.addf %37, %39 : vector<8x128xf32>
      %c0_25 = arith.constant 0 : index
      %c0_26 = arith.constant 0 : index
      %41 = vector.load %arg7[%c0_25, %c0_26] : memref<8x128xf32, #tpu.memory_space<vmem>>, vector<8x128xf32>
      tpu.vector_store %arg7[%c0_25, %c0_26], %40 {strides = array<i32>} : memref<8x128xf32, #tpu.memory_space<vmem>>, vector<8x128xf32>,
    } else {
    }
    %21 = arith.extui %17 : i1 to i32
    %c0_i32_9 = arith.constant 0 : i32
    %22 = arith.cmpi ne, %21, %c0_i32_9 : i32
    scf.if %22 {
      %26 = tpu.iota {dimensions = array<i32: 0>} : vector<16x128xi32>
      %27 = tpu.iota {dimensions = array<i32: 1>} : vector<16x128xi32>
      %c16_i32_12 = arith.constant 16 : i32
      %28 = arith.muli %14, %c16_i32_12 : i32
      %29 = vector.broadcast %28 : i32 to vector<16x128xi32>
      %30 = arith.addi %29, %26 : vector<16x128xi32>
      %c16_i32_13 = arith.constant 16 : i32
      %31 = vector.broadcast %c16_i32_13 : i32 to vector<16x128xi32>
      %32 = arith.cmpi slt, %30, %31 : vector<16x128xi32>
      %c16_i32_14 = arith.constant 16 : i32
      %33 = vector.broadcast %c16_i32_14 : i32 to vector<16x128xi32>
      %34 = arith.cmpi eq, %30, %33 : vector<16x128xi32>
      %c0_i32_15 = arith.constant 0 : i32
      %35 = vector.broadcast %c0_i32_15 : i32 to vector<16x128xi32>
      %36 = arith.cmpi slt, %27, %35 : vector<16x128xi32>
      %37 = arith.andi %34, %36 : vector<16x128xi1>
      %38 = arith.ori %32, %37 : vector<16x128xi1>
      %cst_16 = arith.constant 0.000000e+00 : f32
      %39 = vector.broadcast %cst_16 : f32 to vector<16x128xf32>
      %40 = arith.select %38, %12, %39 : vector<16x128xi1>, vector<16x128xf32>
      %cst_17 = arith.constant 0.000000e+00 : f32
      %41 = vector.broadcast %cst_17 : f32 to vector<16x128xf32>
      %42 = arith.select %38, %5, %41 : vector<16x128xi1>, vector<16x128xf32>
      %c0_18 = arith.constant 0 : index
      %c0_19 = arith.constant 0 : index
      %43 = vector.load %arg5[%c0_18, %c0_19] : memref<8x128xf32, #tpu.memory_space<vmem>>, vector<8x128xf32>
      %44 = arith.mulf %40, %42 : vector<16x128xf32>
      %45 = vector.shape_cast %44 : vector<16x128xf32> to vector<2x8x128xf32>
      %cst_20 = arith.constant dense<0.000000e+00> : vector<8x128xf32>
      %46 = vector.multi_reduction <add>, %45, %cst_20 [0] : vector<2x8x128xf32> to vector<8x128xf32>
      %47 = arith.addf %43, %46 : vector<8x128xf32>
      %c0_21 = arith.constant 0 : index
      %c0_22 = arith.constant 0 : index
      %48 = vector.load %arg5[%c0_21, %c0_22] : memref<8x128xf32, #tpu.memory_space<vmem>>, vector<8x128xf32>
      tpu.vector_store %arg5[%c0_21, %c0_22], %47 {strides = array<i32>} : memref<8x128xf32, #tpu.memory_space<vmem>>, vector<8x128xf32>,
      %c0_23 = arith.constant 0 : index
      %c0_24 = arith.constant 0 : index
      %49 = vector.load %arg6[%c0_23, %c0_24] : memref<8x128xf32, #tpu.memory_space<vmem>>, vector<8x128xf32>
      %50 = vector.shape_cast %40 : vector<16x128xf32> to vector<2x8x128xf32>
      %cst_25 = arith.constant dense<0.000000e+00> : vector<8x128xf32>
      %51 = vector.multi_reduction <add>, %50, %cst_25 [0] : vector<2x8x128xf32> to vector<8x128xf32>
      %52 = arith.addf %49, %51 : vector<8x128xf32>
      %c0_26 = arith.constant 0 : index
      %c0_27 = arith.constant 0 : index
      %53 = vector.load %arg6[%c0_26, %c0_27] : memref<8x128xf32, #tpu.memory_space<vmem>>, vector<8x128xf32>
      tpu.vector_store %arg6[%c0_26, %c0_27], %52 {strides = array<i32>} : memref<8x128xf32, #tpu.memory_space<vmem>>, vector<8x128xf32>,
      %c0_28 = arith.constant 0 : index
      %c0_29 = arith.constant 0 : index
      %54 = vector.load %arg7[%c0_28, %c0_29] : memref<8x128xf32, #tpu.memory_space<vmem>>, vector<8x128xf32>
      %55 = vector.shape_cast %42 : vector<16x128xf32> to vector<2x8x128xf32>
      %cst_30 = arith.constant dense<0.000000e+00> : vector<8x128xf32>
      %56 = vector.multi_reduction <add>, %55, %cst_30 [0] : vector<2x8x128xf32> to vector<8x128xf32>
      %57 = arith.addf %54, %56 : vector<8x128xf32>
      %c0_31 = arith.constant 0 : index
      %c0_32 = arith.constant 0 : index
      %58 = vector.load %arg7[%c0_31, %c0_32] : memref<8x128xf32, #tpu.memory_space<vmem>>, vector<8x128xf32>
      tpu.vector_store %arg7[%c0_31, %c0_32], %57 {strides = array<i32>} : memref<8x128xf32, #tpu.memory_space<vmem>>, vector<8x128xf32>,
    } else {
    }
    %c0_i32_10 = arith.constant 0 : i32
    %23 = arith.cmpi eq, %arg1, %c0_i32_10 : i32
    %24 = arith.extui %23 : i1 to i32
    %c0_i32_11 = arith.constant 0 : i32
    %25 = arith.cmpi ne, %24, %c0_i32_11 : i32
    scf.if %25 {
      %c0_12 = arith.constant 0 : index
      %c0_13 = arith.constant 0 : index
      %26 = vector.load %arg5[%c0_12, %c0_13] : memref<8x128xf32, #tpu.memory_space<vmem>>, vector<8x128xf32>
      %c0_14 = arith.constant 0 : index
      %c0_15 = arith.constant 0 : index
      %c0_16 = arith.constant 0 : index
      %c0_17 = arith.constant 0 : index
      %27 = vector.load %arg4[%c0_14, %c0_15, %c0_16, %c0_17] : memref<1x3x8x128xf32, #tpu.memory_space<vmem>>, vector<1x1x8x128xf32>
      %28 = vector.shape_cast %27 : vector<1x1x8x128xf32> to vector<8x128xf32>
      %29 = vector.shape_cast %26 : vector<8x128xf32> to vector<1x1x8x128xf32>
      tpu.vector_store %arg4[%c0_14, %c0_15, %c0_16, %c0_17], %29 {strides = array<i32>} : memref<1x3x8x128xf32, #tpu.memory_space<vmem>>, vector<1x1x8x128xf32>,
      %c0_18 = arith.constant 0 : index
      %c0_19 = arith.constant 0 : index
      %30 = vector.load %arg6[%c0_18, %c0_19] : memref<8x128xf32, #tpu.memory_space<vmem>>, vector<8x128xf32>
      %c0_20 = arith.constant 0 : index
      %c1 = arith.constant 1 : index
      %c0_21 = arith.constant 0 : index
      %c0_22 = arith.constant 0 : index
      %31 = vector.load %arg4[%c0_20, %c1, %c0_21, %c0_22] : memref<1x3x8x128xf32, #tpu.memory_space<vmem>>, vector<1x1x8x128xf32>
      %32 = vector.shape_cast %31 : vector<1x1x8x128xf32> to vector<8x128xf32>
      %33 = vector.shape_cast %30 : vector<8x128xf32> to vector<1x1x8x128xf32>
      tpu.vector_store %arg4[%c0_20, %c1, %c0_21, %c0_22], %33 {strides = array<i32>} : memref<1x3x8x128xf32, #tpu.memory_space<vmem>>, vector<1x1x8x128xf32>,
      %c0_23 = arith.constant 0 : index
      %c0_24 = arith.constant 0 : index
      %34 = vector.load %arg7[%c0_23, %c0_24] : memref<8x128xf32, #tpu.memory_space<vmem>>, vector<8x128xf32>
      %c0_25 = arith.constant 0 : index
      %c2 = arith.constant 2 : index
      %c0_26 = arith.constant 0 : index
      %c0_27 = arith.constant 0 : index
      %35 = vector.load %arg4[%c0_25, %c2, %c0_26, %c0_27] : memref<1x3x8x128xf32, #tpu.memory_space<vmem>>, vector<1x1x8x128xf32>
      %36 = vector.shape_cast %35 : vector<1x1x8x128xf32> to vector<8x128xf32>
      %37 = vector.shape_cast %34 : vector<8x128xf32> to vector<1x1x8x128xf32>
      tpu.vector_store %arg4[%c0_25, %c2, %c0_26, %c0_27], %37 {strides = array<i32>} : memref<1x3x8x128xf32, #tpu.memory_space<vmem>>, vector<1x1x8x128xf32>,
    } else {
    }
    return
  }
  func.func @transform_0(%arg0: i32, %arg1: i32) -> (i32, i32) {
    %c1_i32 = arith.constant 1 : i32
    %0 = arith.muli %arg0, %c1_i32 : i32
    %1 = arith.addi %0, %arg1 : i32
    %c0_i32 = arith.constant 0 : i32
    %2 = arith.minsi %1, %c0_i32 : i32
    %c0_i32_0 = arith.constant 0 : i32
    %c0_i32_1 = arith.constant 0 : i32
    return %2, %c0_i32_0 : i32, i32
  }
  func.func @transform_1(%arg0: i32, %arg1: i32) -> (i32, i32) {
    %c1_i32 = arith.constant 1 : i32
    %0 = arith.muli %arg0, %c1_i32 : i32
    %1 = arith.addi %0, %arg1 : i32
    %c0_i32 = arith.constant 0 : i32
    %2 = arith.minsi %1, %c0_i32 : i32
    %c0_i32_0 = arith.constant 0 : i32
    %c0_i32_1 = arith.constant 0 : i32
    return %2, %c0_i32_0 : i32, i32
  }
  func.func @transform_2(%arg0: i32, %arg1: i32) -> (i32, i32, i32, i32) {
    %c0_i32 = arith.constant 0 : i32
    %c0_i32_0 = arith.constant 0 : i32
    %c0_i32_1 = arith.constant 0 : i32
    %c0_i32_2 = arith.constant 0 : i32
    return %arg0, %c0_i32, %c0_i32_0, %c0_i32_1 : i32, i32, i32, i32
  }
}

</mosaic_0001>

<llo_original>
// kernel: tpu_custom_call.1
$region0: #{tpu_custom_call.1}
  #allocation0 [shape = 'u32[]', space=smem, size = 0x4, offset = 0x4, fixed_abs, tag = 'smem constant byte address 0x4 - core index']
  #allocation1 [shape = 'u32[144,128]{1,0:T(1,128)}', space=vmem, size = 0x12000, scoped, tag = 'internal scratch']
  #allocation2 [shape = 'f32[8,128]{1,0:T(8,128)}', space=vmem, size = 0x1000, scoped, tag = 'scratch operand']
  #allocation3 [shape = 'f32[8,128]{1,0:T(8,128)}', space=vmem, size = 0x1000, scoped, tag = 'scratch operand']
  #allocation4 [shape = 'f32[8,128]{1,0:T(8,128)}', space=vmem, size = 0x1000, scoped, tag = 'scratch operand']
  %s0 = inlined_call_operand.hbm [shape: f32[16,128], index: 0, kind: input, shape index: {}]
  %s1 = inlined_call_operand.hbm [shape: bf16[16,128], index: 1, kind: input, shape index: {}]
  %s2 = inlined_call_operand.hbm [shape: f32[2,3,8,128], index: 2, kind: output, shape index: {}]
  %s3 = sld [smem:[#allocation0]]
  $region65: #{tpu_custom_call.1} parent=0
    _
  %s5 = ssub.s32 1, %s3
  %s6 = scalar_select 0, %s5, %s3
  $region1: #{tpu_custom_call.1} parent=0
    #allocation5 [shape = 'u8[16384]{0}', space=vmem, size = 0x4000, scoped, tag = 'input window, operand 0']
    #allocation6 [shape = 's32[2]{0}', space=sflag, size = 0x8, scoped, tag = 'scoped memory for tpu_custom_call.1']
    #allocation7 [shape = 's32[2]{0}', space=sflag, size = 0x8, scoped, tag = 'scoped memory for tpu_custom_call.1']
    #allocation8 [shape = 'u8[8192]{0}', space=vmem, size = 0x2000, scoped, tag = 'input window, operand 1']
    #allocation9 [shape = 's32[2]{0}', space=sflag, size = 0x8, scoped, tag = 'scoped memory for tpu_custom_call.1']
    #allocation10 [shape = 'u8[24576]{0}', space=vmem, size = 0x6000, scoped, tag = 'output window, operand 0']
    %7 = vsyncpa [#allocation6], 0
    %s8 = scalar_lea.sflag [#allocation6], 1
    %9 = vsyncpa %s8, 0
    %10 = vsyncpa [#allocation9], 0
    %s11 = scalar_lea.sflag [#allocation9], 1
    %12 = vsyncpa %s11, 0
    %13 = vsyncpa [#allocation7], 0
    %s14 = scalar_lea.sflag [#allocation7], 1
    %15 = vsyncpa %s14, 0
    loop: start=0, step=1, limit=4
    $region2: #{tpu_custom_call.1} parent=1 // loop_pre_header
      _
    $region3: #{tpu_custom_call.1} parent=1 // loop_header
      %s17 = sphi 0, %s21
      %p18 = scmp.ge.s32.totalorder %s17, 4
      %s24 = sphi 0, %s36
      %s25 = sphi 0, %s32
      %s26 = sphi 0, %s24
      %s27 = sphi 0, %s25
      %s28 = sphi 0, %s26
      %s29 = sphi 0, %s27
      %s45 = sphi 0, %s47
      %s48 = sphi 0, %s45
      %s49 = sphi 0, %s48
      %s65 = sphi 0, %s49
      %s77 = sphi 0, %s79
      %s80 = sphi 0, %s77
      %s81 = sphi 0, %s80
      %s97 = sphi 0, %s81
      %s103 = sphi 0, %s105
      %s106 = sphi 0, %s103
      %s107 = sphi 0, %s106
      %s123 = sphi 0, %s107
    $region4: #{tpu_custom_call.1} parent=1 // loop_header_branch
      %20 = sbr.rel (%p18) target = $region8
    $region5: #{tpu_custom_call.1} parent=1 // loop_body
      %s22 = ssub.s32 %s17, 1
      %s23 = ssub.s32 %s17, 2
      %s30 = sadd.s32 1, %s25
      %p31 = scmp.ge.s32.totalorder %s30, 1
      %s32 = scalar_select %p31, 0, %s30
      %s33 = sadd.s32 1, %s24
      %s34 = scalar_select %p31, %s33, %s24
      %p35 = scmp.ge.s32.totalorder %s34, 2
      %s36 = scalar_select %p35, 0, %s34
      %s37 = sadd.s32 %s24, %s25
      %p38 = scmp.lt.s32.totalorder %s37, 0
      %s39 = scalar_select %p38, %s37, 0
      %s40 = sadd.s32 %s36, %s32
      %p41 = scmp.lt.s32.totalorder %s40, 0
      %s42 = scalar_select %p41, %s40, 0
      %s43 = ssub.s32 %s39, %s42
      %p44 = scmp.eq.s32.totalorder %s43, 0
      %s46 = sadd.s32 %s45, 1
      %s47 = scalar_select %p44, %s45, %s46
      %p50 = pneg %p44
      %p51 = scmp.eq.s32.totalorder %s17, 1
      %p52 = por %p50, %p51
      %p53 = scmp.ne.s32.totalorder %s45, %s48
      %p54 = scmp.eq.s32.totalorder %s17, 0
      %p55 = por %p53, %p54
      %p56 = scmp.ne.s32.totalorder %s45, %s48
      %p57 = scmp.eq.s32.totalorder %s22, 1
      %p58 = por %p56, %p57
      %p59 = scmp.ne.s32.totalorder %s48, %s49
      %p60 = scmp.eq.s32.totalorder %s22, 0
      %p61 = por %p59, %p60
      %p62 = scmp.ne.s32.totalorder %s48, %s49
      %p63 = scmp.eq.s32.totalorder %s23, 1
      %p64 = por %p62, %p63
      %p66 = scmp.ne.s32.totalorder %s49, %s65
      %p67 = scmp.eq.s32.totalorder %s23, 0
      %p68 = por %p66, %p67
      %s69 = sadd.s32 %s24, %s25
      %p70 = scmp.lt.s32.totalorder %s69, 0
      %s71 = scalar_select %p70, %s69, 0
      %s72 = sadd.s32 %s36, %s32
      %p73 = scmp.lt.s32.totalorder %s72, 0
      %s74 = scalar_select %p73, %s72, 0
      %s75 = ssub.s32 %s71, %s74
      %p76 = scmp.eq.s32.totalorder %s75, 0
      %s78 = sadd.s32 %s77, 1
      %s79 = scalar_select %p76, %s77, %s78
      %p82 = pneg %p76
      %p83 = scmp.eq.s32.totalorder %s17, 1
      %p84 = por %p82, %p83
      %p85 = scmp.ne.s32.totalorder %s77, %s80
      %p86 = scmp.eq.s32.totalorder %s17, 0
      %p87 = por %p85, %p86
      %p88 = scmp.ne.s32.totalorder %s77, %s80
      %p89 = scmp.eq.s32.totalorder %s22, 1
      %p90 = por %p88, %p89
      %p91 = scmp.ne.s32.totalorder %s80, %s81
      %p92 = scmp.eq.s32.totalorder %s22, 0
      %p93 = por %p91, %p92
      %p94 = scmp.ne.s32.totalorder %s80, %s81
      %p95 = scmp.eq.s32.totalorder %s23, 1
      %p96 = por %p94, %p95
      %p98 = scmp.ne.s32.totalorder %s81, %s97
      %p99 = scmp.eq.s32.totalorder %s23, 0
      %p100 = por %p98, %p99
      %s101 = ssub.s32 %s24, %s36
      %p102 = scmp.eq.s32.totalorder %s101, 0
      %s104 = sadd.s32 %s103, 1
      %s105 = scalar_select %p102, %s103, %s104
      %p108 = pneg %p102
      %p109 = scmp.eq.s32.totalorder %s17, 1
      %p110 = por %p108, %p109
      %p111 = scmp.ne.s32.totalorder %s103, %s106
      %p112 = scmp.eq.s32.totalorder %s17, 0
      %p113 = por %p111, %p112
      %p114 = scmp.ne.s32.totalorder %s103, %s106
      %p115 = scmp.eq.s32.totalorder %s22, 1
      %p116 = por %p114, %p115
      %p117 = scmp.ne.s32.totalorder %s106, %s107
      %p118 = scmp.eq.s32.totalorder %s22, 0
      %p119 = por %p117, %p118
      %p120 = scmp.ne.s32.totalorder %s106, %s107
      %p121 = scmp.eq.s32.totalorder %s23, 1
      %p122 = por %p120, %p121
      %p124 = scmp.ne.s32.totalorder %s107, %s123
      %p125 = scmp.eq.s32.totalorder %s23, 0
      %p126 = por %p124, %p125
      %p127 = scmp.le.s32.totalorder 1, %s17
      %p128 = scmp.lt.s32.totalorder %s17, 3
      %p129 = pnand %p127, %p128
      %p130 = pneg %p129
      // Predicated region
      $region9: #{tpu_custom_call.1} parent=5 // pred_check
        _
      $region10: #{tpu_custom_call.1} parent=5 // pred_check_branch
        %132 = sbr.rel (%p129) target = $region12
      $region11: #{tpu_custom_call.1} parent=5 // pred_region
        %s133 = ssub.s32 %s17, 1
      $region12: #{tpu_custom_call.1} parent=5 // pred_fallthru
        _
      %p134 = scmp.lt.s32.totalorder %s17, 2
      // Predicated region
      $region13: #{tpu_custom_call.1} parent=5 // pred_check
        %p135 = pneg %p134
      $region14: #{tpu_custom_call.1} parent=5 // pred_check_branch
        %137 = sbr.rel (%p135) target = $region16
      $region15: #{tpu_custom_call.1} parent=5 // pred_region
        // Predicated region
        $region17: #{tpu_custom_call.1} parent=15 // pred_check
          %p138 = pneg %p55
        $region18: #{tpu_custom_call.1} parent=15 // pred_check_branch
          %140 = sbr.rel (%p138) target = $region20
        $region19: #{tpu_custom_call.1} parent=15 // pred_region
          %s141 = sand.u32 %s45, 1
          %s142 = scalar_lea.sflag [#allocation6], %s141
          %s143 = sand.u32 %s45, 1
          %s144 = smul.addr %s143, 16
          %s145 = scalar_lea.vmem [#allocation5], %s144
          %s146 = sadd.s32 %s24, %s25
          %p147 = scmp.lt.s32.totalorder %s146, 0
          %s148 = scalar_select %p147, %s146, 0
          %s149 = smul.u32 2, %s148
          %s151 = ssub.s32 256, 256
          %152 = vsyncadd %s142, %s151
          %s153 = smul.addr %s149, 128
          %s154 = scalar_lea.hbm %s0, %s153
          %s155 = sshll.u32 %s145, 4
          %s156 = int_to_ptr.vmem [resolvable:$true] %s155
          %161 = dma.hbm_to_vmem [thread:$0]  %s154, 256, %s156, %s142, 128, 128, 8
        $region20: #{tpu_custom_call.1} parent=15 // pred_fallthru
          _
        // Predicated region
        $region21: #{tpu_custom_call.1} parent=15 // pred_check
          %p162 = pneg %p87
        $region22: #{tpu_custom_call.1} parent=15 // pred_check_branch
          %164 = sbr.rel (%p162) target = $region24
        $region23: #{tpu_custom_call.1} parent=15 // pred_region
          %s165 = sand.u32 %s77, 1
          %s166 = scalar_lea.sflag [#allocation9], %s165
          %s167 = sand.u32 %s77, 1
          %s168 = smul.addr %s167, 8
          %s169 = scalar_lea.vmem [#allocation8], %s168
          %s170 = sadd.s32 %s24, %s25
          %p171 = scmp.lt.s32.totalorder %s170, 0
          %s172 = scalar_select %p171, %s170, 0
          %s173 = smul.u32 2, %s172
          %s175 = ssub.s32 128, 128
          %176 = vsyncadd %s166, %s175
          %s177 = smul.addr %s173, 64
          %s178 = scalar_lea.hbm %s1, %s177
          %s179 = sshll.u32 %s169, 4
          %s180 = int_to_ptr.vmem [resolvable:$true] %s179
          %185 = dma.hbm_to_vmem [thread:$0]  %s178, 128, %s180, %s166, 64, 64, 4
        $region24: #{tpu_custom_call.1} parent=15 // pred_fallthru
          _
      $region16: #{tpu_custom_call.1} parent=5 // pred_fallthru
        _
      %p186 = scmp.le.s32.totalorder 1, %s17
      %p187 = scmp.lt.s32.totalorder %s17, 3
      %p188 = pnand %p186, %p187
      %p189 = pneg %p188
      // Predicated region
      $region25: #{tpu_custom_call.1} parent=5 // pred_check
        _
      $region26: #{tpu_custom_call.1} parent=5 // pred_check_branch
        %191 = sbr.rel (%p188) target = $region28
      $region27: #{tpu_custom_call.1} parent=5 // pred_region
        %s192 = ssub.s32 %s17, 1
        %s193 = sand.u32 %s48, 1
        %s194 = scalar_lea.sflag [#allocation6], %s193
        %s195 = sand.u32 %s48, 1
        %s196 = smul.addr %s195, 16
        %s197 = scalar_lea.vmem [#allocation5], %s196
        // Predicated region
        $region29: #{tpu_custom_call.1} parent=27 // pred_check
          %p198 = pneg %p61
        $region30: #{tpu_custom_call.1} parent=27 // pred_check_branch
          %200 = sbr.rel (%p198) target = $region32
        $region31: #{tpu_custom_call.1} parent=27 // pred_region
          %201 = dma.done %s194, 256
        $region32: #{tpu_custom_call.1} parent=27 // pred_fallthru
          _
        %s202 = sand.u32 %s80, 1
        %s203 = scalar_lea.sflag [#allocation9], %s202
        %s204 = sand.u32 %s80, 1
        %s205 = smul.addr %s204, 8
        %s206 = scalar_lea.vmem [#allocation8], %s205
        // Predicated region
        $region33: #{tpu_custom_call.1} parent=27 // pred_check
          %p207 = pneg %p93
        $region34: #{tpu_custom_call.1} parent=27 // pred_check_branch
          %209 = sbr.rel (%p207) target = $region36
        $region35: #{tpu_custom_call.1} parent=27 // pred_region
          %210 = dma.done %s203, 128
        $region36: #{tpu_custom_call.1} parent=27 // pred_fallthru
          _
        %s211 = sand.u32 %s48, 1
        %s212 = scalar_lea.sflag [#allocation6], %s211
        %s213 = sand.u32 %s48, 1
        %s214 = smul.addr %s213, 16
        %s215 = scalar_lea.vmem [#allocation5], %s214
        %p216 = pneg %p61
        %p217 = pneg %p58
        %s218 = sand.u32 %s80, 1
        %s219 = scalar_lea.sflag [#allocation9], %s218
        %s220 = sand.u32 %s80, 1
        %s221 = smul.addr %s220, 8
        %s222 = scalar_lea.vmem [#allocation8], %s221
        %p223 = pneg %p93
        %p224 = pneg %p90
        %p225 = pneg %p119
        %p226 = pneg %p116
        %s227 = sand.u32 %s106, 1
        %s228 = scalar_lea.sflag [#allocation7], %s227
        %s229 = sand.u32 %s106, 1
        %s230 = smul.addr %s229, 24
        %s231 = scalar_lea.vmem [#allocation10], %s230
        %s232 = sadd.s32 %s26, %s27
        %p233 = scmp.lt.s32.totalorder %s232, 0
        %s234 = scalar_select %p233, %s232, 0
        %s235 = smul.u32 2, %s234
        %s236 = sadd.s32 %s26, %s27
        %p237 = scmp.lt.s32.totalorder %s236, 0
        %s238 = scalar_select %p237, %s236, 0
        %s239 = smul.u32 2, %s238
        %p240 = scmp.eq.s32.totalorder %s27, 0
        // Predicated region
        $region37: #{tpu_custom_call.1} parent=27 // pred_check
          %p241 = pneg %p240
        $region38: #{tpu_custom_call.1} parent=27 // pred_check_branch
          %243 = sbr.rel (%p241) target = $region40
        $region39: #{tpu_custom_call.1} parent=27 // pred_region
          %244 = vst [vmem:[#allocation2] sm:$0xff] 0.0
          %245 = vst [vmem:[#allocation3] sm:$0xff] 0.0
          %246 = vst [vmem:[#allocation4] sm:$0xff] 0.0
        $region40: #{tpu_custom_call.1} parent=27 // pred_fallthru
          _
        %v247 = vld [vmem:[%s197] sm:$0xff]
        %v248 = vld [vmem:[%s197 + $0x8] sm:$0xff]
        %v249 = vld [vmem:[%s206] sm:$0xf]
        %v250 = vld [vmem:[%s206 + $0x4] sm:$0xf]
        %v251 = vunpack.c.l.bf16 %v249
        %v252 = vunpack.c.l.bf16 %v250
        %v253 = vmul.f32 %v247, 0.5
        %v254 = vmul.f32 %v248, 0.5
        %v255 = vtanh.pop %v253
        %v256 = vtanh.pop %v254
        %v257 = vmul.f32 %v255, 0.5
        %v258 = vmul.f32 %v256, 0.5
        %v259 = vadd.f32 %v257, 0.5
        %v260 = vadd.f32 %v258, 0.5
        %s261 = sadd.s32 %s26, %s27
        %s262 = sadd.s32 %s261, 1
        %s263 = smul.u32 %s262, 16
        %p264 = scmp.gt.s32.totalorder %s263, 16
        %p265 = scmp.le.s32.totalorder %s263, 16
        // Predicated region
        $region41: #{tpu_custom_call.1} parent=27 // pred_check
          %p266 = pneg %p265
        $region42: #{tpu_custom_call.1} parent=27 // pred_check_branch
          %268 = sbr.rel (%p266) target = $region44
        $region43: #{tpu_custom_call.1} parent=27 // pred_region
          %v269 = vld [vmem:[#allocation2] sm:$0xff]
          %v270 = vmul.f32 %v259, %v251
          %v271 = vmul.f32 %v260, %v252
          %v272 = vadd.f32 %v270, %v271
          %v273 = vadd.f32 %v269, %v272
          %274 = vst [vmem:[#allocation2] sm:$0xff] %v273
          %v275 = vld [vmem:[#allocation3] sm:$0xff]
          %v276 = vadd.f32 %v259, %v260
          %v277 = vadd.f32 %v275, %v276
          %278 = vst [vmem:[#allocation3] sm:$0xff] %v277
          %v279 = vld [vmem:[#allocation4] sm:$0xff]
          %v280 = vadd.f32 %v251, %v252
          %v281 = vadd.f32 %v279, %v280
          %282 = vst [vmem:[#allocation4] sm:$0xff] %v281
        $region44: #{tpu_custom_call.1} parent=27 // pred_fallthru
          _
        // Predicated region
        $region45: #{tpu_custom_call.1} parent=27 // pred_check
          %p283 = pneg %p264
        $region46: #{tpu_custom_call.1} parent=27 // pred_check_branch
          %285 = sbr.rel (%p283) target = $region48
        $region47: #{tpu_custom_call.1} parent=27 // pred_region
          %v286 = vlaneseq
          %v287 = vshrl.u32 %v286, 7
          %v288 = vadd.s32 %v287, 8
          %v289 = vlaneseq
          %v290 = vand.u32 %v289, 127
          %s291 = smul.u32 %s261, 16
          %v292 = vstv %s291
          %v293 = vadd.s32 %v292, %v287
          %v294 = vadd.s32 %v292, %v288
          %vm295 = vcmp.lt.s32.totalorder %v293, 16
          %vm296 = vcmp.lt.s32.totalorder %v294, 16
          %vm297 = vcmp.eq.s32.totalorder %v293, 16
          %vm298 = vcmp.eq.s32.totalorder %v294, 16
          %vm299 = vcmp.lt.s32.totalorder %v290, 0
          %vm300 = vmand %vm297, %vm299
          %vm301 = vmand %vm298, %vm299
          %vm302 = vmor %vm295, %vm300
          %vm303 = vmor %vm296, %vm301
          %v304 = vsel %vm302, %v259, 0.0
          %v305 = vsel %vm303, %v260, 0.0
          %v306 = vsel %vm302, %v251, 0.0
          %v307 = vsel %vm303, %v252, 0.0
          %v308 = vld [vmem:[#allocation2] sm:$0xff]
          %v309 = vmul.f32 %v304, %v306
          %v310 = vmul.f32 %v305, %v307
          %v311 = vadd.f32 %v309, %v310
          %v312 = vadd.f32 %v308, %v311
          %313 = vst [vmem:[#allocation2] sm:$0xff] %v312
          %v314 = vld [vmem:[#allocation3] sm:$0xff]
          %v315 = vadd.f32 %v304, %v305
          %v316 = vadd.f32 %v314, %v315
          %317 = vst [vmem:[#allocation3] sm:$0xff] %v316
          %v318 = vld [vmem:[#allocation4] sm:$0xff]
          %v319 = vadd.f32 %v306, %v307
          %v320 = vadd.f32 %v318, %v319
          %321 = vst [vmem:[#allocation4] sm:$0xff] %v320
        $region48: #{tpu_custom_call.1} parent=27 // pred_fallthru
          _
        // Predicated region
        $region49: #{tpu_custom_call.1} parent=27 // pred_check
          %p322 = pneg %p240
        $region50: #{tpu_custom_call.1} parent=27 // pred_check_branch
          %324 = sbr.rel (%p322) target = $region52
        $region51: #{tpu_custom_call.1} parent=27 // pred_region
          %v325 = vld [vmem:[#allocation2] sm:$0xff]
          %326 = vst [vmem:[%s231] sm:$0xff] %v325
          %v327 = vld [vmem:[#allocation3] sm:$0xff]
          %s328 = scalar_lea.vmem %s231, 8 [#allocation10]
          %329 = vst [vmem:[%s328] sm:$0xff] %v327
          %v330 = vld [vmem:[#allocation4] sm:$0xff]
          %s331 = scalar_lea.vmem %s231, 16 [#allocation10]
          %332 = vst [vmem:[%s331] sm:$0xff] %v330
        $region52: #{tpu_custom_call.1} parent=27 // pred_fallthru
          _
        %s333 = sand.u32 %s106, 1
        %s334 = scalar_lea.sflag [#allocation7], %s333
        %s335 = sand.u32 %s106, 1
        %s336 = smul.addr %s335, 24
        %s337 = scalar_lea.vmem [#allocation10], %s336
        // Predicated region
        $region53: #{tpu_custom_call.1} parent=27 // pred_check
          %p338 = pneg %p116
        $region54: #{tpu_custom_call.1} parent=27 // pred_check_branch
          %340 = sbr.rel (%p338) target = $region56
        $region55: #{tpu_custom_call.1} parent=27 // pred_region
          %s342 = ssub.s32 384, 384
          %343 = vsyncadd %s334, %s342
          %s344 = smul.addr %s26, 3
          %s345 = smul.addr %s344, 128
          %s346 = scalar_lea.hbm %s2, %s345
          %s347 = sshll.u32 %s337, 4
          %s348 = int_to_ptr.vmem [resolvable:$true] %s347
          %353 = dma.vmem_to_hbm [thread:$0]  %s348, 384, %s346, %s334, 128, 128, 8
        $region56: #{tpu_custom_call.1} parent=27 // pred_fallthru
          _
      $region28: #{tpu_custom_call.1} parent=5 // pred_fallthru
        _
      %p354 = scmp.le.s32.totalorder 2, %s17
      // Predicated region
      $region57: #{tpu_custom_call.1} parent=5 // pred_check
        %p355 = pneg %p354
      $region58: #{tpu_custom_call.1} parent=5 // pred_check_branch
        %357 = sbr.rel (%p355) target = $region60
      $region59: #{tpu_custom_call.1} parent=5 // pred_region
        %s358 = ssub.s32 %s17, 2
        // Predicated region
        $region61: #{tpu_custom_call.1} parent=59 // pred_check
          %p359 = pneg %p122
        $region62: #{tpu_custom_call.1} parent=59 // pred_check_branch
          %361 = sbr.rel (%p359) target = $region64
        $region63: #{tpu_custom_call.1} parent=59 // pred_region
          %s362 = sand.u32 %s107, 1
          %s363 = scalar_lea.sflag [#allocation7], %s362
          %s364 = sand.u32 %s107, 1
          %s365 = smul.addr %s364, 24
          %s366 = scalar_lea.vmem [#allocation10], %s365
          %367 = dma.done %s363, 384
        $region64: #{tpu_custom_call.1} parent=59 // pred_fallthru
          _
      $region60: #{tpu_custom_call.1} parent=5 // pred_fallthru
        _
    $region6: #{tpu_custom_call.1} parent=1 // loop_footer
      %s21 = sadd.s32 1, %s17
    $region7: #{tpu_custom_call.1} parent=1 // loop_footer_branch
      %16 = sbr.rel target = $region3
    $region8: #{tpu_custom_call.1} parent=1 // loop_exit
      _
    %368 = vsyncpa [#allocation6], 1
    %s369 = scalar_lea.sflag [#allocation6], 1
    %370 = vsyncpa %s369, 1
    %371 = vsyncpa [#allocation9], 1
    %s372 = scalar_lea.sflag [#allocation9], 1
    %373 = vsyncpa %s372, 1
    %374 = vsyncpa [#allocation7], 1
    %s375 = scalar_lea.sflag [#allocation7], 1
    %376 = vsyncpa %s375, 1

</llo_original>
